<compile_context>
chip_gen: v7x
topology: tpu7x:2x2x1
jax: 0.10.0
libtpu: 0.0.40
codegen_flags: <defaults>
</compile_context>

<pallas_src>
import functools
import math

import jax
import jax.numpy as jnp
from jax import lax
from jax.experimental import pallas as pl
from jax.experimental.pallas import tpu as pltpu


# --------------------------- generation-aware sizing helpers ----------------------------

def _tpu_vmem_capacity_bytes():
    try:
        return int(pltpu.get_tpu_info().vmem_capacity_bytes)
    except Exception:
        return 64 * 1024 * 1024          # conservative fallback (v7x per-TC VMEM)


def _vmem_limit_bytes(cap=None):
    cap = _tpu_vmem_capacity_bytes() if cap is None else cap
    # Leave ~25% headroom for double buffers / compiler scratch:
    # v7x (64 MiB) -> 48 MiB, v5e/v6e (128 MiB) -> 96 MiB.
    return int(min(cap - cap // 4, 100 * 1024 * 1024))


def _pick_hsub(H, dk, max_lanes):
    """Largest divisor of H whose lane width hsub*dk is 128-aligned (or the full head
    dim) and fits in max_lanes, so q/k/v/out tiles are lane-dense, legal blocks."""
    best = None
    for hs in range(1, H + 1):
        if H % hs:
            continue
        hd = hs * dk
        if (hd % 128 == 0 or hs == H) and hd <= max(max_lanes, dk):
            best = hs
    return best if best is not None else H


# ----------------------------- tiled linear: x @ W.T + b --------------------------------

def _linear_kernel(x_ref, w_ref, b_ref, o_ref):
    # x: (tm, Fin) bf16, w: (Fout, Fin) bf16 (torch nn.Linear layout), b: (1, Fout) f32.
    acc = lax.dot_general(x_ref[...], w_ref[...],
                          (((1,), (1,)), ((), ())),
                          preferred_element_type=jnp.float32)
    o_ref[...] = (acc + b_ref[...]).astype(o_ref.dtype)


def linear_pallas(x, w, b=None, *, out_dtype=jnp.bfloat16, tm=512):
    """x: (M, Fin), w: (Fout, Fin) torch layout, b: (Fout,) or None -> (M, Fout).
    Inputs are cast to bf16 once (full bf16 MXU rate, halved HBM traffic); the matmul
    accumulates in f32 and the bias is added in f32 before the output cast."""
    M, Fin = x.shape
    Fout = w.shape[0]
    bias = (jnp.zeros((1, Fout), jnp.float32) if b is None
            else b.reshape(1, Fout).astype(jnp.float32))
    tm = min(tm, M)
    # TODO(synk): single-buffer the constant (Fout, Fin) weight block for very large F so
    #             it is not double-buffered in VMEM.
    return pl.pallas_call(
        _linear_kernel,
        out_shape=jax.ShapeDtypeStruct((M, Fout), out_dtype),
        grid=(pl.cdiv(M, tm),),
        in_specs=[
            pl.BlockSpec((tm, Fin), lambda i: (i, 0)),
            pl.BlockSpec((Fout, Fin), lambda i: (0, 0)),
            pl.BlockSpec((1, Fout), lambda i: (0, 0)),
        ],
        out_specs=pl.BlockSpec((tm, Fout), lambda i: (i, 0)),
        compiler_params=pltpu.CompilerParams(
            dimension_semantics=("parallel",),
            vmem_limit_bytes=_vmem_limit_bytes(),
        ),
    )(x.astype(jnp.bfloat16), w.astype(jnp.bfloat16), bias)


# --------------------- relative-position attention (head-block x batch) ------------------

def _relpos_attn_kernel(q_ref, k_ref, v_ref, p_ref, bu_ref, bv_ref, mask_ref, o_ref,
                        *, hsub, dk, T):
    inv_sqrt_dk = 1.0 / math.sqrt(dk)
    neg = jnp.finfo(jnp.float32).min
    Ppad = p_ref.shape[1]
    masked = mask_ref[0] == 0                         # (1, T2) bool, broadcasts over rows
    dims = (((1,), (1,)), ((), ()))                   # contract over d_k, no transposes

    # TODO(synk): flash-style key/position tiling (online softmax) for very long T on
    #             v7x's 64 MiB VMEM; this kernel materializes (T,T)/(T,Ppad) per head.
    ctxs = []
    for s in range(hsub):                             # static loop over heads in this block
        sl = slice(s * dk, (s + 1) * dk)
        q = q_ref[:, sl]                              # (T, dk)   bf16
        k = k_ref[:, sl]                              # (T, dk)
        v = v_ref[:, sl]                              # (T, dk)
        p = p_ref[0, :, sl]                           # (Ppad, dk) zero rows >= 2T-1
        q_u = q + bu_ref[:, sl]
        q_v = q + bv_ref[:, sl]

        # TODO(synk): fold ac/bd into one MXU call with a [p; k] RHS to halve push/drain.
        ac = lax.dot_general(q_u, k, dims, preferred_element_type=jnp.float32)       # (T, T)
        bd_full = lax.dot_general(q_v, p, dims, preferred_element_type=jnp.float32)  # (T, Ppad)

        # rel_shift: bd[i, j] = bd_full[i, (T-1) + j - i] as XLU lane rotations: a uniform
        # cyclic roll by Ppad-(T-1), then a per-sublane (+i) strided roll.  For j < T the
        # source index stays inside [0, 2T-2], never touching the padded columns.
        rolled = pltpu.roll(bd_full, Ppad - (T - 1), 1)
        rolled = pltpu.roll(rolled, 0, 1, stride=1, stride_axis=0)
        bd = rolled[:, :T]                                                            # (T, T)

        scores = (ac + bd) * inv_sqrt_dk
        scores = jnp.where(masked, neg, scores)
        m_row = jnp.max(scores, axis=-1, keepdims=True)
        # TODO(synk): run the exp in bf16 on v6e/v7x (~2x EUP); kept f32 for v5e safety.
        e = jnp.exp(scores - m_row)                       # masked keys underflow to exact 0
        denom = jnp.sum(e, axis=-1, keepdims=True)
        attn = e * pl.reciprocal(denom, approx=True)      # divide on the EUP slot
        # NOTE: post-softmax masked_fill(0) dropped -- exp already yields exact zeros for
        # masked keys; only degenerate fully-masked query rows would differ from torch.
        # TODO(synk): attention dropout omitted (eval-mode semantics / dropout_rate = 0).
        ctxs.append(jnp.dot(attn.astype(v.dtype), v, preferred_element_type=jnp.float32))

    # Single lane-dense (T, hsub*dk) store instead of hsub masked dk-wide partial stores.
    slab = ctxs[0] if hsub == 1 else jnp.concatenate(ctxs, axis=-1)
    o_ref[...] = slab.astype(o_ref.dtype)


def relpos_attention_pallas(q_arr, k_arr, v_arr, p, pos_bias_u, pos_bias_v, mask, *,
                            B, T, H, dk, qkv_fused=False,
                            compute_dtype=jnp.bfloat16, out_dtype=jnp.bfloat16):
    """q_arr/k_arr/v_arr: (B*T, F) each -- or, when qkv_fused, the same (B*T, 3F) array
    whose column blocks are [q | k | v]; p: (Bp, Ppad, F) with Bp in {1, B}, Ppad%128==0;
    biases: (H, dk); mask: (B, 1, T2) int (nonzero = keep)."""
    F = H * dk
    Bp, Ppad, _ = p.shape
    T2 = mask.shape[-1]
    assert mask.ndim == 3 and mask.shape[1] == 1 and T2 == T, \
        "self-attention with a (B, 1, T) key mask expected"
    assert T % 8 == 0, "T must be a multiple of 8"       # TODO(synk): pad ragged T
    assert Ppad % 128 == 0

    vmem_cap = _tpu_vmem_capacity_bytes()
    max_lanes = 512 if vmem_cap >= (100 << 20) else 256   # tighter head tiles on v7x
    hsub = _pick_hsub(H, dk, max_lanes)
    HD = hsub * dk
    nhb = H // hsub
    koff = nhb if qkv_fused else 0
    voff = 2 * nhb if qkv_fused else 0

    bu = pos_bias_u.reshape(1, F).astype(compute_dtype)
    bv = pos_bias_v.reshape(1, F).astype(compute_dtype)

    # Put the longer axis first so megacore (v7x) always sees >=2 units of parallel work;
    # when there is a single head block the position tile / biases stay resident anyway.
    if nhb >= 2:
        grid = (nhb, B)
        gh = lambda i, j: i
        gb = lambda i, j: j
    else:
        grid = (B, nhb)
        gh = lambda i, j: j
        gb = lambda i, j: i

    p_map = ((lambda i, j: (gb(i, j), 0, gh(i, j))) if Bp == B
             else (lambda i, j: (0, 0, gh(i, j))))
    kernel = functools.partial(_relpos_attn_kernel, hsub=hsub, dk=dk, T=T)

    return pl.pallas_call(
        kernel,
        out_shape=jax.ShapeDtypeStruct((B * T, F), out_dtype),
        grid=grid,
        in_specs=[
            pl.BlockSpec((T, HD), lambda i, j: (gb(i, j), gh(i, j))),
            pl.BlockSpec((T, HD), lambda i, j: (gb(i, j), koff + gh(i, j))),
            pl.BlockSpec((T, HD), lambda i, j: (gb(i, j), voff + gh(i, j))),
            pl.BlockSpec((1, Ppad, HD), p_map),
            pl.BlockSpec((1, HD), lambda i, j: (0, gh(i, j))),
            pl.BlockSpec((1, HD), lambda i, j: (0, gh(i, j))),
            pl.BlockSpec((1, 1, T2), lambda i, j: (gb(i, j), 0, 0)),
        ],
        out_specs=pl.BlockSpec((T, HD), lambda i, j: (gb(i, j), gh(i, j))),
        compiler_params=pltpu.CompilerParams(
            dimension_semantics=("parallel", "parallel"),
            vmem_limit_bytes=_vmem_limit_bytes(vmem_cap),
        ),
    )(q_arr.astype(compute_dtype), k_arr.astype(compute_dtype), v_arr.astype(compute_dtype),
      p.astype(compute_dtype), bu, bv, mask.astype(jnp.int32))


# ------------------------------------ full forward pass ----------------------------------

def rel_position_mha_forward(params, query, key, value, pos_emb, mask, *,
                             compute_dtype=jnp.bfloat16):
    B, T, F = query.shape
    H, dk = params["pos_bias_u"].shape
    Bp, P, _ = pos_emb.shape

    # Fused q/k/v projection on the self-attention path: one read of the activations,
    # one (3F, F) bf16 matmul.  (Guard on F % 128 so the fused column blocks stay legal.)
    fused = (query is key) and (key is value) and (F % 128 == 0)
    if fused:
        wqkv = jnp.concatenate([params["wq"], params["wk"], params["wv"]], axis=0)
        bqkv = jnp.concatenate([params["bq"], params["bk"], params["bv"]], axis=0)
        qkv = linear_pallas(query.reshape(B * T, F), wqkv, bqkv, out_dtype=compute_dtype)
        q_arr = k_arr = v_arr = qkv
    else:
        q_arr = linear_pallas(query.reshape(B * T, F), params["wq"], params["bq"],
                              out_dtype=compute_dtype)
        k_arr = linear_pallas(key.reshape(B * T, F), params["wk"], params["bk"],
                              out_dtype=compute_dtype)
        v_arr = linear_pallas(value.reshape(B * T, F), params["wv"], params["bv"],
                              out_dtype=compute_dtype)

    # Pad the relative-position axis to a lane-dense multiple of 128 BEFORE the bias-free
    # wpos projection: padded rows stay exactly zero, are never selected by rel_shift, and
    # no extra HBM pad pass over the projected p tensor is needed.
    Ppad = max(128, -(-P // 128) * 128)
    pos_padded = jnp.pad(pos_emb, ((0, 0), (0, Ppad - P), (0, 0)))
    p = linear_pallas(pos_padded.reshape(Bp * Ppad, F), params["wpos"], None,
                      out_dtype=compute_dtype).reshape(Bp, Ppad, F)

    ctx = relpos_attention_pallas(q_arr, k_arr, v_arr, p,
                                  params["pos_bias_u"], params["pos_bias_v"], mask,
                                  B=B, T=T, H=H, dk=dk, qkv_fused=fused,
                                  compute_dtype=compute_dtype, out_dtype=compute_dtype)
    out = linear_pallas(ctx, params["wo"], params["bo"], out_dtype=jnp.float32)
    return out.reshape(B, T, F)


# ------------------------------------ pure-JAX reference ---------------------------------

def ref_forward(params, query, key, value, pos_emb, mask, compute_dtype=jnp.float32):
    """Torch-faithful reference.  compute_dtype=bf16 mirrors the kernel's mixed precision
    (every matmul on bf16 inputs with f32 accumulation)."""
    B, T1, F = query.shape
    H, dk = params["pos_bias_u"].shape
    hi = lax.Precision.HIGHEST
    cd = compute_dtype

    def lin(x, w, b):
        y = jnp.dot(x.astype(cd), w.T.astype(cd), precision=hi,
                    preferred_element_type=jnp.float32)
        return y if b is None else y + b

    def split_heads(x):
        return x.reshape(x.shape[0], x.shape[1], H, dk).transpose(0, 2, 1, 3)

    q = split_heads(lin(query, params["wq"], params["bq"])).astype(cd)
    k = split_heads(lin(key, params["wk"], params["bk"])).astype(cd)
    v = split_heads(lin(value, params["wv"], params["bv"])).astype(cd)
    p = split_heads(lin(pos_emb, params["wpos"], None)).astype(cd)
    if p.shape[0] == 1 and B > 1:
        p = jnp.broadcast_to(p, (B,) + p.shape[1:])

    q_u = q + params["pos_bias_u"][None, :, None, :].astype(cd)
    q_v = q + params["pos_bias_v"][None, :, None, :].astype(cd)
    ac = jnp.einsum("bhqd,bhkd->bhqk", q_u, k,
                    precision=hi, preferred_element_type=jnp.float32)
    bd_full = jnp.einsum("bhqd,bhpd->bhqp", q_v, p,
                         precision=hi, preferred_element_type=jnp.float32)

    # faithful torch rel_shift (zero-pad / reshape trick), zero_triu=False
    Bb, Hh, T, P = bd_full.shape
    zp = jnp.zeros((Bb, Hh, T, 1), bd_full.dtype)
    xp = jnp.concatenate([zp, bd_full], axis=-1).reshape(Bb, Hh, P + 1, T)
    bd = xp[:, :, 1:].reshape(Bb, Hh, T, P)[:, :, :, : P // 2 + 1]

    scores = (ac + bd) / math.sqrt(dk)
    m = mask[:, None, :, :] == 0
    scores = jnp.where(m, jnp.finfo(jnp.float32).min, scores)
    attn = jax.nn.softmax(scores, axis=-1)
    attn = jnp.where(m, 0.0, attn)
    x = jnp.einsum("bhqk,bhkd->bhqd", attn.astype(cd), v,
                   precision=hi, preferred_element_type=jnp.float32)
    x = x.transpose(0, 2, 1, 3).reshape(B, T1, F)
    return lin(x, params["wo"], params["bo"])


# --------------------------------------- main / test -------------------------------------

if __name__ == "__main__":
    B, T, H, dk = 2, 8, 4, 32
    F = H * dk                      # 128 -> lane-dense head blocks, legal fused q/k/v tiles
    P = 2 * T - 1

    root = jax.random.PRNGKey(0)
    ks = jax.random.split(root, 16)

    def xavier(key_, shape):
        fan_out, fan_in = shape
        lim = math.sqrt(6.0 / (fan_in + fan_out))
        return jax.random.uniform(key_, shape, jnp.float32, -lim, lim)

    params = {
        "wq": xavier(ks[0], (F, F)), "bq": 0.02 * jax.random.normal(ks[1], (F,), jnp.float32),
        "wk": xavier(ks[2], (F, F)), "bk": 0.02 * jax.random.normal(ks[3], (F,), jnp.float32),
        "wv": xavier(ks[4], (F, F)), "bv": 0.02 * jax.random.normal(ks[5], (F,), jnp.float32),
        "wo": xavier(ks[6], (F, F)), "bo": 0.02 * jax.random.normal(ks[7], (F,), jnp.float32),
        "wpos": xavier(ks[8], (F, F)),
        "pos_bias_u": xavier(ks[9], (H, dk)),
        "pos_bias_v": xavier(ks[10], (H, dk)),
    }

    x_in = jax.random.normal(ks[11], (B, T, F), jnp.float32)
    pos_emb = jax.random.normal(ks[14], (1, P, F), jnp.float32)
    lengths = jnp.array([T, T - 3])
    mask = (jnp.arange(T)[None, None, :] < lengths[:, None, None]).astype(jnp.int32)  # (B,1,T)

    # --- self-attention path (query is key is value): fused q/k/v projection ---
    out = rel_position_mha_forward(params, x_in, x_in, x_in, pos_emb, mask)
    out = jax.block_until_ready(out)
    assert out.shape == (B, T, F), out.shape

    ref_matched = ref_forward(params, x_in, x_in, x_in, pos_emb, mask,
                              compute_dtype=jnp.bfloat16)
    ref_f32 = ref_forward(params, x_in, x_in, x_in, pos_emb, mask,
                          compute_dtype=jnp.float32)
    err_matched = float(jnp.max(jnp.abs(out - ref_matched)))
    err_f32 = float(jnp.max(jnp.abs(out - ref_f32)))
    assert err_matched < 2e-2, f"fused path: max abs err vs precision-matched ref {err_matched}"
    assert err_f32 < 2e-1, f"fused path: max abs err vs f32 ref {err_f32}"

    # --- distinct q/k/v tensors: exercises the separate-projection path ---
    query = jax.random.normal(ks[12], (B, T, F), jnp.float32)
    key_in = jax.random.normal(ks[13], (B, T, F), jnp.float32)
    value = jax.random.normal(ks[15], (B, T, F), jnp.float32)
    out2 = jax.block_until_ready(
        rel_position_mha_forward(params, query, key_in, value, pos_emb, mask))
    ref2 = ref_forward(params, query, key_in, value, pos_emb, mask,
                       compute_dtype=jnp.bfloat16)
    err2 = float(jnp.max(jnp.abs(out2 - ref2)))
    assert err2 < 2e-2, f"unfused path: max abs err vs precision-matched ref {err2}"

    print("KERNEL_OK")
</pallas_src>

<mosaic_0001>
module attributes {stable_mosaic.version = 11 : i64} {
  func.func @_linear_kernel(%arg0: i32, %arg1: memref<16x128xbf16, #tpu.memory_space<vmem>>, %arg2: memref<384x128xbf16, #tpu.memory_space<vmem>>, %arg3: memref<1x384xf32, #tpu.memory_space<vmem>>, %arg4: memref<16x384xbf16, #tpu.memory_space<vmem>>) attributes {dimension_semantics = [#tpu.dimension_semantics<parallel>], iteration_bounds = array<i64: 1>, scalar_prefetch = 0 : i64, scratch_operands = 0 : i64, tpu.core_type = #tpu.core_type<tc>, window_params = [{transform_indices = @transform_0, window_bounds = array<i64: 16, 128>}, {pipeline_mode = #tpu.pipeline_mode<synchronous>, transform_indices = @transform_1, window_bounds = array<i64: 384, 128>}, {pipeline_mode = #tpu.pipeline_mode<synchronous>, transform_indices = @transform_2, window_bounds = array<i64: 1, 384>}, {transform_indices = @transform_3, window_bounds = array<i64: 16, 384>}]} {
    %c0 = arith.constant 0 : index
    %c0_0 = arith.constant 0 : index
    %0 = vector.load %arg1[%c0, %c0_0] : memref<16x128xbf16, #tpu.memory_space<vmem>>, vector<16x128xbf16>
    %c0_1 = arith.constant 0 : index
    %c0_2 = arith.constant 0 : index
    %1 = vector.load %arg2[%c0_1, %c0_2] : memref<384x128xbf16, #tpu.memory_space<vmem>>, vector<384x128xbf16>
    %cst = arith.constant dense<0.000000e+00> : vector<16x384xf32>
    %2 = tpu.matmul %0, %1, %cst {dimension_numbers = #tpu.dot_dimension_numbers<[1], [1], [0], [0], [0, 0, 1, 0], [], []>} : vector<16x128xbf16>, vector<384x128xbf16>, vector<16x384xf32> -> vector<16x384xf32>
    %c0_3 = arith.constant 0 : index
    %c0_4 = arith.constant 0 : index
    %3 = vector.load %arg3[%c0_3, %c0_4] : memref<1x384xf32, #tpu.memory_space<vmem>>, vector<1x384xf32>
    %4 = vector.broadcast %3 : vector<1x384xf32> to vector<16x384xf32>
    %5 = arith.addf %2, %4 : vector<16x384xf32>
    %6 = arith.truncf %5 : vector<16x384xf32> to vector<16x384xbf16>
    %c0_5 = arith.constant 0 : index
    %c0_6 = arith.constant 0 : index
    %7 = vector.load %arg4[%c0_5, %c0_6] : memref<16x384xbf16, #tpu.memory_space<vmem>>, vector<16x384xbf16>
    tpu.vector_store %arg4[%c0_5, %c0_6], %6 {strides = array<i32>} : memref<16x384xbf16, #tpu.memory_space<vmem>>, vector<16x384xbf16>,
    return
  }
  func.func @transform_0(%arg0: i32) -> (i32, i32) {
    %c0_i32 = arith.constant 0 : i32
    %c0_i32_0 = arith.constant 0 : i32
    return %arg0, %c0_i32 : i32, i32
  }
  func.func @transform_1(%arg0: i32) -> (i32, i32) {
    %c0_i32 = arith.constant 0 : i32
    %c0_i32_0 = arith.constant 0 : i32
    %c0_i32_1 = arith.constant 0 : i32
    return %c0_i32, %c0_i32_0 : i32, i32
  }
  func.func @transform_2(%arg0: i32) -> (i32, i32) {
    %c0_i32 = arith.constant 0 : i32
    %c0_i32_0 = arith.constant 0 : i32
    %c0_i32_1 = arith.constant 0 : i32
    return %c0_i32, %c0_i32_0 : i32, i32
  }
  func.func @transform_3(%arg0: i32) -> (i32, i32) {
    %c0_i32 = arith.constant 0 : i32
    %c0_i32_0 = arith.constant 0 : i32
    return %arg0, %c0_i32 : i32, i32
  }
}

</mosaic_0001>

<llo_original>
// kernel: tpu_custom_call.1
$region0: #{tpu_custom_call.1}
  #allocation0 [shape = 'u32[]', space=smem, size = 0x4, offset = 0x4, fixed_abs, tag = 'smem constant byte address 0x4 - core index']
  #allocation1 [shape = 'u32[144,128]{1,0:T(1,128)}', space=vmem, size = 0x12000, scoped, tag = 'internal scratch']
  %s0 = inlined_call_operand.hbm [shape: bf16[16,128], index: 0, kind: input, shape index: {}]
  %s1 = inlined_call_operand.hbm [shape: bf16[384,128], index: 1, kind: input, shape index: {}]
  %s2 = inlined_call_operand.vmem [shape: f32[1,384], index: 2, kind: input, shape index: {}]
  %s3 = inlined_call_operand.hbm [shape: bf16[16,384], index: 3, kind: output, shape index: {}]
  %s4 = sld [smem:[#allocation0]]
  $region30: #{tpu_custom_call.1} parent=0
    _
  %s6 = ssub.s32 1, %s4
  %s7 = scalar_select 0, %s6, %s4
  $region1: #{tpu_custom_call.1} parent=0
    #allocation2 [shape = 'u8[4096]{0}', space=vmem, size = 0x1000, scoped, tag = 'input window, operand 0, single buffered']
    #allocation3 [shape = 's32[1]{0}', space=sflag, size = 0x4, scoped, tag = 'scoped memory for tpu_custom_call.1']
    #allocation4 [shape = 's32[1]{0}', space=sflag, size = 0x4, scoped, tag = 'scoped memory for tpu_custom_call.1']
    #allocation5 [shape = 'u8[98304]{0}', space=vmem, size = 0x18000, scoped, tag = 'input window, operand 1, single buffered']
    #allocation6 [shape = 's32[1]{0}', space=sflag, size = 0x4, scoped, tag = 'scoped memory for tpu_custom_call.1']
    #allocation7 [shape = 'u8[12288]{0}', space=vmem, size = 0x3000, scoped, tag = 'output window, operand 0, single buffered']
    %8 = vsyncpa [#allocation3], 0
    %9 = vsyncpa [#allocation6], 0
    %10 = vsyncpa [#allocation4], 0
    // Predicated region
    $region2: #{tpu_custom_call.1} parent=1 // pred_check
      _
    $region3: #{tpu_custom_call.1} parent=1 // pred_check_branch
      %12 = sbr.rel (0) target = $region5
    $region4: #{tpu_custom_call.1} parent=1 // pred_region
      %s14 = ssub.s32 128, 128
      %15 = vsyncadd [#allocation3], %s14
      %s16 = sshll.u32 [#allocation2], 4
      %s17 = int_to_ptr.vmem [resolvable:$true] %s16
      %22 = dma.hbm_to_vmem [thread:$0]  %s0, 128, %s17, [#allocation3], 64, 64, 4
    $region5: #{tpu_custom_call.1} parent=1 // pred_fallthru
      _
    // Predicated region
    $region6: #{tpu_custom_call.1} parent=1 // pred_check
      _
    $region7: #{tpu_custom_call.1} parent=1 // pred_check_branch
      %24 = sbr.rel (0) target = $region9
    $region8: #{tpu_custom_call.1} parent=1 // pred_region
      %s26 = ssub.s32 3072, 3072
      %27 = vsyncadd [#allocation6], %s26
      %s28 = sshll.u32 [#allocation5], 4
      %s29 = int_to_ptr.vmem [resolvable:$true] %s28
      %34 = dma.hbm_to_vmem [thread:$0]  %s1, 3072, %s29, [#allocation6], 64, 64, 4
    $region9: #{tpu_custom_call.1} parent=1 // pred_fallthru
      _
    // Predicated region
    $region10: #{tpu_custom_call.1} parent=1 // pred_check
      _
    $region11: #{tpu_custom_call.1} parent=1 // pred_check_branch
      %36 = sbr.rel (0) target = $region13
    $region12: #{tpu_custom_call.1} parent=1 // pred_region
      _
    $region13: #{tpu_custom_call.1} parent=1 // pred_fallthru
      _
    // Predicated region
    $region14: #{tpu_custom_call.1} parent=1 // pred_check
      _
    $region15: #{tpu_custom_call.1} parent=1 // pred_check_branch
      %38 = sbr.rel (0) target = $region17
    $region16: #{tpu_custom_call.1} parent=1 // pred_region
      %39 = dma.done [#allocation3], 128
    $region17: #{tpu_custom_call.1} parent=1 // pred_fallthru
      _
    // Predicated region
    $region18: #{tpu_custom_call.1} parent=1 // pred_check
      _
    $region19: #{tpu_custom_call.1} parent=1 // pred_check_branch
      %41 = sbr.rel (0) target = $region21
    $region20: #{tpu_custom_call.1} parent=1 // pred_region
      %42 = dma.done [#allocation6], 3072
    $region21: #{tpu_custom_call.1} parent=1 // pred_fallthru
      _
    %v44 = vld [vmem:[#allocation2] sm:$0xf]
    %v45 = vld [vmem:[#allocation2 + $0x4] sm:$0xf]
    %v46 = vld [vmem:[#allocation5] sm:$0xf]
    %v47 = vld [vmem:[#allocation5 + $0x4] sm:$0xf]
    %v48 = vld [vmem:[#allocation5 + $0x8] sm:$0xf]
    %v49 = vld [vmem:[#allocation5 + $0xc] sm:$0xf]
    %v50 = vld [vmem:[#allocation5 + $0x10] sm:$0xf]
    %v51 = vld [vmem:[#allocation5 + $0x14] sm:$0xf]
    %v52 = vld [vmem:[#allocation5 + $0x18] sm:$0xf]
    %v53 = vld [vmem:[#allocation5 + $0x1c] sm:$0xf]
    %v54 = vld [vmem:[#allocation5 + $0x20] sm:$0xf]
    %v55 = vld [vmem:[#allocation5 + $0x24] sm:$0xf]
    %v56 = vld [vmem:[#allocation5 + $0x28] sm:$0xf]
    %v57 = vld [vmem:[#allocation5 + $0x2c] sm:$0xf]
    %v58 = vld [vmem:[#allocation5 + $0x30] sm:$0xf]
    %v59 = vld [vmem:[#allocation5 + $0x34] sm:$0xf]
    %v60 = vld [vmem:[#allocation5 + $0x38] sm:$0xf]
    %v61 = vld [vmem:[#allocation5 + $0x3c] sm:$0xf]
    %v62 = vld [vmem:[#allocation5 + $0x40] sm:$0xf]
    %v63 = vld [vmem:[#allocation5 + $0x44] sm:$0xf]
    %v64 = vld [vmem:[#allocation5 + $0x48] sm:$0xf]
    %v65 = vld [vmem:[#allocation5 + $0x4c] sm:$0xf]
    %v66 = vld [vmem:[#allocation5 + $0x50] sm:$0xf]
    %v67 = vld [vmem:[#allocation5 + $0x54] sm:$0xf]
    %v68 = vld [vmem:[#allocation5 + $0x58] sm:$0xf]
    %v69 = vld [vmem:[#allocation5 + $0x5c] sm:$0xf]
    %v70 = vld [vmem:[#allocation5 + $0x60] sm:$0xf]
    %v71 = vld [vmem:[#allocation5 + $0x64] sm:$0xf]
    %v72 = vld [vmem:[#allocation5 + $0x68] sm:$0xf]
    %v73 = vld [vmem:[#allocation5 + $0x6c] sm:$0xf]
    %v74 = vld [vmem:[#allocation5 + $0x70] sm:$0xf]
    %v75 = vld [vmem:[#allocation5 + $0x74] sm:$0xf]
    %v76 = vld [vmem:[#allocation5 + $0x78] sm:$0xf]
    %v77 = vld [vmem:[#allocation5 + $0x7c] sm:$0xf]
    %v78 = vld [vmem:[#allocation5 + $0x80] sm:$0xf]
    %v79 = vld [vmem:[#allocation5 + $0x84] sm:$0xf]
    %v80 = vld [vmem:[#allocation5 + $0x88] sm:$0xf]
    %v81 = vld [vmem:[#allocation5 + $0x8c] sm:$0xf]
    %v82 = vld [vmem:[#allocation5 + $0x90] sm:$0xf]
    %v83 = vld [vmem:[#allocation5 + $0x94] sm:$0xf]
    %v84 = vld [vmem:[#allocation5 + $0x98] sm:$0xf]
    %v85 = vld [vmem:[#allocation5 + $0x9c] sm:$0xf]
    %v86 = vld [vmem:[#allocation5 + $0xa0] sm:$0xf]
    %v87 = vld [vmem:[#allocation5 + $0xa4] sm:$0xf]
    %v88 = vld [vmem:[#allocation5 + $0xa8] sm:$0xf]
    %v89 = vld [vmem:[#allocation5 + $0xac] sm:$0xf]
    %v90 = vld [vmem:[#allocation5 + $0xb0] sm:$0xf]
    %v91 = vld [vmem:[#allocation5 + $0xb4] sm:$0xf]
    %v92 = vld [vmem:[#allocation5 + $0xb8] sm:$0xf]
    %v93 = vld [vmem:[#allocation5 + $0xbc] sm:$0xf]
    %v94 = vld [vmem:[%s2] sm:$0x7]
    %v96 = vlaneseq
    %v97 = vshrl.u32 %v96, 7
    %v98 = vsub.s32 0, %v97
    %v99 = vrot.slane %v94, %v98
    %v100 = vlaneseq
    %v101 = vshrl.u32 %v100, 7
    %v102 = vsub.s32 1, %v101
    %v103 = vrot.slane %v94, %v102
    %v104 = vlaneseq
    %v105 = vshrl.u32 %v104, 7
    %v106 = vsub.s32 2, %v105
    %v107 = vrot.slane %v94, %v106
    %v113 = vunpack.c.l.b16 %v44
    %v114 = vunpack.c.l.b16 %v45
    %v115 = vpack.c.b16 %v114, %v113
    %v165 = vunpack.c.l.b16 %v46
    %v166 = vunpack.c.l.b16 %v47
    %v167 = vunpack.c.l.b16 %v48
    %v168 = vunpack.c.l.b16 %v49
    %v169 = vunpack.c.l.b16 %v50
    %v170 = vunpack.c.l.b16 %v51
    %v171 = vunpack.c.l.b16 %v52
    %v172 = vunpack.c.l.b16 %v53
    %v173 = vunpack.c.l.b16 %v54
    %v174 = vunpack.c.l.b16 %v55
    %v175 = vunpack.c.l.b16 %v56
    %v176 = vunpack.c.l.b16 %v57
    %v177 = vunpack.c.l.b16 %v58
    %v178 = vunpack.c.l.b16 %v59
    %v179 = vunpack.c.l.b16 %v60
    %v180 = vunpack.c.l.b16 %v61
    %v181 = vunpack.c.l.b16 %v62
    %v182 = vunpack.c.l.b16 %v63
    %v183 = vunpack.c.l.b16 %v64
    %v184 = vunpack.c.l.b16 %v65
    %v185 = vunpack.c.l.b16 %v66
    %v186 = vunpack.c.l.b16 %v67
    %v187 = vunpack.c.l.b16 %v68
    %v188 = vunpack.c.l.b16 %v69
    %v189 = vunpack.c.l.b16 %v70
    %v190 = vunpack.c.l.b16 %v71
    %v191 = vunpack.c.l.b16 %v72
    %v192 = vunpack.c.l.b16 %v73
    %v193 = vunpack.c.l.b16 %v74
    %v194 = vunpack.c.l.b16 %v75
    %v195 = vunpack.c.l.b16 %v76
    %v196 = vunpack.c.l.b16 %v77
    %v197 = vunpack.c.l.b16 %v78
    %v198 = vunpack.c.l.b16 %v79
    %v199 = vunpack.c.l.b16 %v80
    %v200 = vunpack.c.l.b16 %v81
    %v201 = vunpack.c.l.b16 %v82
    %v202 = vunpack.c.l.b16 %v83
    %v203 = vunpack.c.l.b16 %v84
    %v204 = vunpack.c.l.b16 %v85
    %v205 = vunpack.c.l.b16 %v86
    %v206 = vunpack.c.l.b16 %v87
    %v207 = vunpack.c.l.b16 %v88
    %v208 = vunpack.c.l.b16 %v89
    %v209 = vunpack.c.l.b16 %v90
    %v210 = vunpack.c.l.b16 %v91
    %v211 = vunpack.c.l.b16 %v92
    %v212 = vunpack.c.l.b16 %v93
    %v213 = vpack.c.b16 %v166, %v165
    %v214 = vpack.c.b16 %v168, %v167
    %v215 = vpack.c.b16 %v170, %v169
    %v216 = vpack.c.b16 %v172, %v171
    %v217 = vpack.c.b16 %v174, %v173
    %v218 = vpack.c.b16 %v176, %v175
    %v219 = vpack.c.b16 %v178, %v177
    %v220 = vpack.c.b16 %v180, %v179
    %v221 = vpack.c.b16 %v182, %v181
    %v222 = vpack.c.b16 %v184, %v183
    %v223 = vpack.c.b16 %v186, %v185
    %v224 = vpack.c.b16 %v188, %v187
    %v225 = vpack.c.b16 %v190, %v189
    %v226 = vpack.c.b16 %v192, %v191
    %v227 = vpack.c.b16 %v194, %v193
    %v228 = vpack.c.b16 %v196, %v195
    %v229 = vpack.c.b16 %v198, %v197
    %v230 = vpack.c.b16 %v200, %v199
    %v231 = vpack.c.b16 %v202, %v201
    %v232 = vpack.c.b16 %v204, %v203
    %v233 = vpack.c.b16 %v206, %v205
    %v234 = vpack.c.b16 %v208, %v207
    %v235 = vpack.c.b16 %v210, %v209
    %v236 = vpack.c.b16 %v212, %v211
    %261 = vmatprep.subr.bf16.mxu0 0
    %262 = vmatpush1.bf16.xpose.msra.mxu0 %v213
    %263 = vmatprep.subr.bf16.mxu0 0
    %264 = vmatpush1.bf16.xpose.msra.mxu0 %v214
    %265 = vmatprep.subr.bf16.mxu0 0
    %266 = vmatpush1.bf16.xpose.msra.mxu0 %v215
    %267 = vmatprep.subr.bf16.mxu0 0
    %268 = vmatpush1.bf16.xpose.msra.mxu0 %v216
    %269 = vmatprep.subr.bf16.mxu0 0
    %270 = vmatpush1.bf16.xpose.msra.mxu0 %v217
    %271 = vmatprep.subr.bf16.mxu0 0
    %272 = vmatpush1.bf16.xpose.msra.mxu0 %v218
    %273 = vmatprep.subr.bf16.mxu0 0
    %274 = vmatpush1.bf16.xpose.msra.mxu0 %v219
    %275 = vmatprep.subr.bf16.mxu0 0
    %276 = vmatpush1.bf16.xpose.msra.mxu0 %v220
    %277 = vmatprep.subr.bf16.mxu0 0
    %278 = vmatpush1.bf16.xpose.msra.mxu0 %v221
    %279 = vmatprep.subr.bf16.mxu0 0
    %280 = vmatpush1.bf16.xpose.msra.mxu0 %v222
    %281 = vmatprep.subr.bf16.mxu0 0
    %282 = vmatpush1.bf16.xpose.msra.mxu0 %v223
    %283 = vmatprep.subr.bf16.mxu0 0
    %284 = vmatpush1.bf16.xpose.msra.mxu0 %v224
    %285 = vmatprep.subr.bf16.mxu0 0
    %286 = vmatpush1.bf16.xpose.msra.mxu0 %v225
    %287 = vmatprep.subr.bf16.mxu0 0
    %288 = vmatpush1.bf16.xpose.msra.mxu0 %v226
    %289 = vmatprep.subr.bf16.mxu0 0
    %290 = vmatpush1.bf16.xpose.msra.mxu0 %v227
    %291 = vmatprep.subr.bf16.mxu0 0
    %292 = vmatpush1.bf16.xpose.msra.mxu0 %v228
    %293 = vmatprep.mubr.bf16.mxu0 0
    %294 = vmatmul.mubr.bf16.gmra.mrb[0].mxu0 %v115
    %v295 = vpop.f32.mrb[0].mxu0
    %v296 = vadd.f32 %v99, %v295
    %v297 = vpop.f32.mrb[0].mxu0
    %v298 = vadd.f32 %v103, %v297
    %v299 = vpop.f32.mrb[0].mxu0
    %v300 = vadd.f32 %v99, %v299
    %v301 = vpop.f32.mrb[0].mxu0
    %v302 = vadd.f32 %v103, %v301
    %303 = vdwg.mxu0
    %304 = vmatprep.subr.bf16.mxu0 0
    %305 = vmatpush1.bf16.xpose.msra.mxu0 %v229
    %306 = vmatprep.subr.bf16.mxu0 0
    %307 = vmatpush1.bf16.xpose.msra.mxu0 %v230
    %308 = vmatprep.subr.bf16.mxu0 0
    %309 = vmatpush1.bf16.xpose.msra.mxu0 %v231
    %310 = vmatprep.subr.bf16.mxu0 0
    %311 = vmatpush1.bf16.xpose.msra.mxu0 %v232
    %312 = vmatprep.subr.bf16.mxu0 0
    %313 = vmatpush1.bf16.xpose.msra.mxu0 %v233
    %314 = vmatprep.subr.bf16.mxu0 0
    %315 = vmatpush1.bf16.xpose.msra.mxu0 %v234
    %316 = vmatprep.subr.bf16.mxu0 0
    %317 = vmatpush1.bf16.xpose.msra.mxu0 %v235
    %318 = vmatprep.subr.bf16.mxu0 0
    %319 = vmatpush1.bf16.xpose.msra.mxu0 %v236
    %320 = vmatprep.subr.bf16.mxu0 0
    %321 = vmatpush1.bf16.xpose.msra.mxu0 0
    %322 = vmatprep.subr.bf16.mxu0 0
    %323 = vmatpush1.bf16.xpose.msra.mxu0 0
    %324 = vmatprep.subr.bf16.mxu0 0
    %325 = vmatpush1.bf16.xpose.msra.mxu0 0
    %326 = vmatprep.subr.bf16.mxu0 0
    %327 = vmatpush1.bf16.xpose.msra.mxu0 0
    %328 = vmatprep.subr.bf16.mxu0 0
    %329 = vmatpush1.bf16.xpose.msra.mxu0 0
    %330 = vmatprep.subr.bf16.mxu0 0
    %331 = vmatpush1.bf16.xpose.msra.mxu0 0
    %332 = vmatprep.subr.bf16.mxu0 0
    %333 = vmatpush1.bf16.xpose.msra.mxu0 0
    %334 = vmatprep.subr.bf16.mxu0 0
    %335 = vmatpush1.bf16.xpose.msra.mxu0 0
    %336 = vmatprep.mubr.bf16.mxu0 0
    %337 = vmatmul.mubr.bf16.gmra.mrb[0].mxu0 %v115
    %v338 = vpop.f32.mrb[0].mxu0
    %v339 = vadd.f32 %v107, %v338
    %v340 = vpop.f32.mrb[0].mxu0
    %v341 = vpop.f32.mrb[0].mxu0
    %v342 = vadd.f32 %v107, %v341
    %v343 = vpop.f32.mrb[0].mxu0
    %344 = vdwg.mxu0
    %v345 = vpack.c.bf16 %v300, %v296
    %v346 = vpack.c.bf16 %v302, %v298
    %v347 = vpack.c.bf16 %v342, %v339
    %v351 = vunpack.c.l.b16 %v345
    %v352 = vunpack.c.l.b16 %v346
    %v353 = vunpack.c.l.b16 %v347
    %v354 = vunpack.c.h.b16 %v345
    %v355 = vunpack.c.h.b16 %v346
    %v356 = vunpack.c.h.b16 %v347
    %v357 = vpack.c.b16 %v352, %v351
    %v358 = vpack.c.b16 %v353, %v353
    %v359 = vpack.c.b16 %v355, %v354
    %v360 = vpack.c.b16 %v356, %v356
    %365 = vst [vmem:[#allocation7] sm:$0xff] %v357
    %366 = vst [vmem:[#allocation7 + $0x8] sm:$0xf] %v358
    %367 = vst [vmem:[#allocation7 + $0xc] sm:$0xff] %v359
    %368 = vst [vmem:[#allocation7 + $0x14] sm:$0xf] %v360
    // Predicated region
    $region22: #{tpu_custom_call.1} parent=1 // pred_check
      _
    $region23: #{tpu_custom_call.1} parent=1 // pred_check_branch
      %370 = sbr.rel (0) target = $region25
    $region24: #{tpu_custom_call.1} parent=1 // pred_region
      %s372 = ssub.s32 384, 384
      %373 = vsyncadd [#allocation4], %s372
      %s374 = sshll.u32 [#allocation7], 4
      %s375 = int_to_ptr.vmem [resolvable:$true] %s374
      %380 = dma.vmem_to_hbm [thread:$0]  %s375, 384, %s3, [#allocation4], 192, 192, 12
    $region25: #{tpu_custom_call.1} parent=1 // pred_fallthru
      _
    // Predicated region
    $region26: #{tpu_custom_call.1} parent=1 // pred_check
      _
    $region27: #{tpu_custom_call.1} parent=1 // pred_check_branch
      %382 = sbr.rel (0) target = $region29
    $region28: #{tpu_custom_call.1} parent=1 // pred_region
      %383 = dma.done [#allocation4], 384
    $region29: #{tpu_custom_call.1} parent=1 // pred_fallthru
      _
    %384 = vsyncpa [#allocation3], 1
    %385 = vsyncpa [#allocation6], 1
    %386 = vsyncpa [#allocation4], 1

</llo_original>
